<compile_context>
chip_gen: v6e
topology: v6e:2x2x1
jax: 0.10.0
libtpu: 0.0.40
codegen_flags: <defaults>
</compile_context>

<pallas_src>
import functools
import math

import jax
import jax.numpy as jnp
from jax.experimental import pallas as pl
from jax.experimental.pallas import tpu as pltpu

_LANE = 128
_SUBLANE = 8


def _round_up(n, m):
    return ((n + m - 1) // m) * m


def _mdn_kernel(x_ref,
                w1_ref, b1_ref,
                w2_ref, b2_ref,
                w3_ref, b3_ref,
                wh_ref, bh_ref,
                out_ref,
                *, n_components, half_range, mid):
    # Backbone MLP: (Linear -> ReLU) x 3.  Operands are cast to the weight
    # dtype (bf16 on v6e/v7x) right before each MXU dot; accumulation and all
    # elementwise work stay f32.
    x = x_ref[...]
    h = jnp.dot(x.astype(w1_ref.dtype), w1_ref[...],
                preferred_element_type=jnp.float32) + b1_ref[...]
    h = jnp.maximum(h, 0.0)
    h = jnp.dot(h.astype(w2_ref.dtype), w2_ref[...],
                preferred_element_type=jnp.float32) + b2_ref[...]
    h = jnp.maximum(h, 0.0)
    h = jnp.dot(h.astype(w3_ref.dtype), w3_ref[...],
                preferred_element_type=jnp.float32) + b3_ref[...]
    h = jnp.maximum(h, 0.0)

    # Fused heads: [wloc || wscale || 0-pad] -> one lane-dense (TB, 128) tile.
    head = jnp.dot(h.astype(wh_ref.dtype), wh_ref[...],
                   preferred_element_type=jnp.float32) + bh_ref[...]

    # Columns [n, 2n) are the scale head: Sigmoid then affine rescale with
    # betas = [0.5, 2].  Columns [0, n) (loc) and the zero padding pass through.
    scale_all = jax.nn.sigmoid(head) * half_range + mid
    col = jax.lax.broadcasted_iota(jnp.int32, head.shape, 1)
    is_scale = jnp.logical_and(col >= n_components, col < 2 * n_components)
    out_ref[...] = jnp.where(is_scale, scale_all, head).astype(out_ref.dtype)


def mixture_component_network(x, params, n_components=3, *, block_b=512,
                              interpret=False):
    """Full MDN forward in one batch-tiled Pallas kernel.

    Returns (y_loc, y_scale), each (B, n_components, 1), i.e. the parameters of
    the Normal distribution the PyTorch module builds.
    """
    w1, b1 = params["w1"], params["b1"].astype(jnp.float32)
    w2, b2 = params["w2"], params["b2"].astype(jnp.float32)
    w3, b3 = params["w3"], params["b3"].astype(jnp.float32)

    compute_dtype = w1.dtype
    x = jnp.asarray(x).astype(compute_dtype)
    B, x_dim = x.shape

    # Fuse the two heads and zero-pad to a lane-dense width of 128 so the
    # output store is an unmasked full-lane vst.
    out_w = _LANE
    wh = jnp.concatenate([params["wloc"], params["wscale"]], axis=1)
    wh = jnp.pad(wh, ((0, 0), (0, out_w - wh.shape[1]))).astype(compute_dtype)
    bh = jnp.concatenate([params["bloc"], params["bscale"]],
                         axis=1).astype(jnp.float32)
    bh = jnp.pad(bh, ((0, 0), (0, out_w - bh.shape[1])))

    # Batch tiling: pad B to a sublane multiple, pick the batch tile, then pad
    # again so the grid covers the array exactly (zero rows, sliced off later).
    b_pad = _round_up(max(B, _SUBLANE), _SUBLANE)
    tb = min(block_b, b_pad)
    b_pad = _round_up(b_pad, tb)
    if b_pad != B:
        x = jnp.pad(x, ((0, b_pad - B), (0, 0)))
    grid = (b_pad // tb,)

    # Sigma-VAE-style rescale constants: betas = [0.5, 2].
    lower, upper = math.sqrt(0.5), math.sqrt(2.0)
    half_range = (upper - lower) / 2.0
    mid = (upper + lower) / 2.0

    def _resident(arr):
        return pl.BlockSpec(arr.shape, lambda i: (0, 0))

    in_specs = [
        pl.BlockSpec((tb, x_dim), lambda i: (i, 0)),
        _resident(w1), _resident(b1),
        _resident(w2), _resident(b2),
        _resident(w3), _resident(b3),
        _resident(wh), _resident(bh),
    ]
    out_specs = pl.BlockSpec((tb, out_w), lambda i: (i, 0))

    h1, h2, h3 = w1.shape[1], w2.shape[1], w3.shape[1]
    flops = 2 * b_pad * (x_dim * h1 + h1 * h2 + h2 * h3 + h3 * out_w)
    bytes_accessed = (
        x.size * x.dtype.itemsize
        + sum(a.size * a.dtype.itemsize
              for a in (w1, b1, w2, b2, w3, b3, wh, bh))
        + b_pad * out_w * 4)
    cost = pl.CostEstimate(flops=flops,
                           transcendentals=b_pad * out_w,
                           bytes_accessed=bytes_accessed)

    out = pl.pallas_call(
        functools.partial(_mdn_kernel, n_components=n_components,
                          half_range=half_range, mid=mid),
        out_shape=jax.ShapeDtypeStruct((b_pad, out_w), jnp.float32),
        grid_spec=pltpu.PrefetchScalarGridSpec(
            num_scalar_prefetch=0,
            grid=grid,
            in_specs=in_specs,
            out_specs=out_specs),
        compiler_params=pltpu.CompilerParams(
            dimension_semantics=("parallel",),
            vmem_limit_bytes=32 * 1024 * 1024),
        cost_estimate=cost,
        interpret=interpret,
    )(x, w1, b1, w2, b2, w3, b3, wh, bh)

    y_loc = out[:B, :n_components].reshape(B, n_components, 1)
    y_scale = out[:B, n_components:2 * n_components].reshape(B, n_components, 1)
    return y_loc, y_scale


def init_params(key, x_dim, hdim=(64, 128, 64), n_components=3, std=0.1):
    """Deterministic synthetic parameters. Weights [in, out], biases [1, out]."""
    dims = (x_dim,) + tuple(hdim)
    keys = jax.random.split(key, 5)
    params = {}
    for i, name in enumerate(("1", "2", "3")):
        k_w, _ = jax.random.split(keys[i])
        params["w" + name] = std * jax.random.normal(
            k_w, (dims[i], dims[i + 1]), dtype=jnp.float32)
        params["b" + name] = jnp.zeros((1, dims[i + 1]), dtype=jnp.float32)
    params["wloc"] = std * jax.random.normal(keys[3], (dims[-1], n_components),
                                             jnp.float32)
    params["bloc"] = jnp.zeros((1, n_components), jnp.float32)
    params["wscale"] = std * jax.random.normal(keys[4], (dims[-1], n_components),
                                               jnp.float32)
    params["bscale"] = jnp.zeros((1, n_components), jnp.float32)
    return params


def cast_weights(params, dtype):
    """bf16 weight path for v6e/v7x MXU; biases stay f32."""
    out = dict(params)
    for k in ("w1", "w2", "w3", "wloc", "wscale"):
        out[k] = params[k].astype(dtype)
    return out


def reference_forward(x, params):
    """Pure-JAX f32 reference for correctness check."""
    h = jnp.maximum(x @ params["w1"] + params["b1"], 0.0)
    h = jnp.maximum(h @ params["w2"] + params["b2"], 0.0)
    h = jnp.maximum(h @ params["w3"] + params["b3"], 0.0)
    loc = h @ params["wloc"] + params["bloc"]
    s = jax.nn.sigmoid(h @ params["wscale"] + params["bscale"])
    lb, ub = math.sqrt(0.5), math.sqrt(2.0)
    scale = s * (ub - lb) / 2.0 + (ub + lb) / 2.0
    n_components = loc.shape[-1]
    return loc.reshape(-1, n_components, 1), scale.reshape(-1, n_components, 1)


if __name__ == "__main__":
    key = jax.random.PRNGKey(0)
    k_x, k_p, k_x2 = jax.random.split(key, 3)

    B, x_dim, n_components = 8, 16, 3
    x = jax.random.normal(k_x, (B, x_dim), dtype=jnp.float32)
    params = init_params(k_p, x_dim, hdim=(64, 128, 64),
                         n_components=n_components)

    # --- f32 path, small batch (single grid step) ------------------------
    y_loc, y_scale = mixture_component_network(x, params,
                                               n_components=n_components)
    jax.block_until_ready((y_loc, y_scale))
    ref_loc, ref_scale = reference_forward(x, params)
    assert y_loc.shape == (B, n_components, 1)
    assert y_scale.shape == (B, n_components, 1)
    assert jnp.allclose(y_loc, ref_loc, atol=1e-5, rtol=1e-5)
    assert jnp.allclose(y_scale, ref_scale, atol=1e-5, rtol=1e-5)
    assert bool((y_scale >= 0).all())

    # --- multi-tile grid path (batch not divisible by the tile) ----------
    B2 = 520
    x2 = jax.random.normal(k_x2, (B2, x_dim), dtype=jnp.float32)
    y_loc2, y_scale2 = mixture_component_network(x2, params,
                                                 n_components=n_components,
                                                 block_b=256)
    jax.block_until_ready((y_loc2, y_scale2))
    ref_loc2, ref_scale2 = reference_forward(x2, params)
    assert y_loc2.shape == (B2, n_components, 1)
    assert jnp.allclose(y_loc2, ref_loc2, atol=1e-5, rtol=1e-5)
    assert jnp.allclose(y_scale2, ref_scale2, atol=1e-5, rtol=1e-5)
    assert bool((y_scale2 >= 0).all())

    # --- bf16-weight path (v6e/v7x MXU), f32 accumulation ----------------
    params_bf16 = cast_weights(params, jnp.bfloat16)
    y_loc3, y_scale3 = mixture_component_network(x2, params_bf16,
                                                 n_components=n_components,
                                                 block_b=256)
    jax.block_until_ready((y_loc3, y_scale3))
    assert jnp.allclose(y_loc3, ref_loc2, atol=5e-2, rtol=5e-2)
    assert jnp.allclose(y_scale3, ref_scale2, atol=5e-2, rtol=5e-2)
    assert bool((y_scale3 >= 0).all())

    # TODO(synk): the PyTorch module returns a torch.distributions.Normal;
    # here we return its (loc, scale) parameter tensors instead.
    print("KERNEL_OK")
</pallas_src>

<mosaic_0001>
module attributes {stable_mosaic.version = 11 : i64} {
  func.func @_mdn_kernel(%arg0: i32, %arg1: memref<8x16xf32, #tpu.memory_space<vmem>>, %arg2: memref<16x64xf32, #tpu.memory_space<vmem>>, %arg3: memref<1x64xf32, #tpu.memory_space<vmem>>, %arg4: memref<64x128xf32, #tpu.memory_space<vmem>>, %arg5: memref<1x128xf32, #tpu.memory_space<vmem>>, %arg6: memref<128x64xf32, #tpu.memory_space<vmem>>, %arg7: memref<1x64xf32, #tpu.memory_space<vmem>>, %arg8: memref<64x128xf32, #tpu.memory_space<vmem>>, %arg9: memref<1x128xf32, #tpu.memory_space<vmem>>, %arg10: memref<8x128xf32, #tpu.memory_space<vmem>>) attributes {dimension_semantics = [#tpu.dimension_semantics<parallel>], iteration_bounds = array<i64: 1>, scalar_prefetch = 0 : i64, scratch_operands = 0 : i64, tpu.core_type = #tpu.core_type<tc>, window_params = [{transform_indices = @transform_0, window_bounds = array<i64: 8, 16>}, {pipeline_mode = #tpu.pipeline_mode<synchronous>, transform_indices = @transform_1, window_bounds = array<i64: 16, 64>}, {pipeline_mode = #tpu.pipeline_mode<synchronous>, transform_indices = @transform_2, window_bounds = array<i64: 1, 64>}, {pipeline_mode = #tpu.pipeline_mode<synchronous>, transform_indices = @transform_3, window_bounds = array<i64: 64, 128>}, {pipeline_mode = #tpu.pipeline_mode<synchronous>, transform_indices = @transform_4, window_bounds = array<i64: 1, 128>}, {pipeline_mode = #tpu.pipeline_mode<synchronous>, transform_indices = @transform_5, window_bounds = array<i64: 128, 64>}, {pipeline_mode = #tpu.pipeline_mode<synchronous>, transform_indices = @transform_6, window_bounds = array<i64: 1, 64>}, {pipeline_mode = #tpu.pipeline_mode<synchronous>, transform_indices = @transform_7, window_bounds = array<i64: 64, 128>}, {pipeline_mode = #tpu.pipeline_mode<synchronous>, transform_indices = @transform_8, window_bounds = array<i64: 1, 128>}, {transform_indices = @transform_9, window_bounds = array<i64: 8, 128>}]} {
    %c0 = arith.constant 0 : index
    %c0_0 = arith.constant 0 : index
    %0 = vector.load %arg1[%c0, %c0_0] : memref<8x16xf32, #tpu.memory_space<vmem>>, vector<8x16xf32>
    %c0_1 = arith.constant 0 : index
    %c0_2 = arith.constant 0 : index
    %1 = vector.load %arg2[%c0_1, %c0_2] : memref<16x64xf32, #tpu.memory_space<vmem>>, vector<16x64xf32>
    %cst = arith.constant dense<0.000000e+00> : vector<8x64xf32>
    %2 = tpu.matmul %0, %1, %cst {dimension_numbers = #tpu.dot_dimension_numbers<[1], [0], [0], [1], [0, 0, 1, 1], [], []>} : vector<8x16xf32>, vector<16x64xf32>, vector<8x64xf32> -> vector<8x64xf32>
    %c0_3 = arith.constant 0 : index
    %c0_4 = arith.constant 0 : index
    %3 = vector.load %arg3[%c0_3, %c0_4] : memref<1x64xf32, #tpu.memory_space<vmem>>, vector<1x64xf32>
    %4 = vector.broadcast %3 : vector<1x64xf32> to vector<8x64xf32>
    %5 = arith.addf %2, %4 : vector<8x64xf32>
    %cst_5 = arith.constant 0.000000e+00 : f32
    %6 = vector.broadcast %cst_5 : f32 to vector<8x64xf32>
    %7 = arith.maximumf %5, %6 : vector<8x64xf32>
    %c0_6 = arith.constant 0 : index
    %c0_7 = arith.constant 0 : index
    %8 = vector.load %arg4[%c0_6, %c0_7] : memref<64x128xf32, #tpu.memory_space<vmem>>, vector<64x128xf32>
    %cst_8 = arith.constant dense<0.000000e+00> : vector<8x128xf32>
    %9 = tpu.matmul %7, %8, %cst_8 {dimension_numbers = #tpu.dot_dimension_numbers<[1], [0], [0], [1], [0, 0, 1, 1], [], []>} : vector<8x64xf32>, vector<64x128xf32>, vector<8x128xf32> -> vector<8x128xf32>
    %c0_9 = arith.constant 0 : index
    %c0_10 = arith.constant 0 : index
    %10 = vector.load %arg5[%c0_9, %c0_10] : memref<1x128xf32, #tpu.memory_space<vmem>>, vector<1x128xf32>
    %11 = vector.broadcast %10 : vector<1x128xf32> to vector<8x128xf32>
    %12 = arith.addf %9, %11 : vector<8x128xf32>
    %cst_11 = arith.constant 0.000000e+00 : f32
    %13 = vector.broadcast %cst_11 : f32 to vector<8x128xf32>
    %14 = arith.maximumf %12, %13 : vector<8x128xf32>
    %c0_12 = arith.constant 0 : index
    %c0_13 = arith.constant 0 : index
    %15 = vector.load %arg6[%c0_12, %c0_13] : memref<128x64xf32, #tpu.memory_space<vmem>>, vector<128x64xf32>
    %cst_14 = arith.constant dense<0.000000e+00> : vector<8x64xf32>
    %16 = tpu.matmul %14, %15, %cst_14 {dimension_numbers = #tpu.dot_dimension_numbers<[1], [0], [0], [1], [0, 0, 1, 1], [], []>} : vector<8x128xf32>, vector<128x64xf32>, vector<8x64xf32> -> vector<8x64xf32>
    %c0_15 = arith.constant 0 : index
    %c0_16 = arith.constant 0 : index
    %17 = vector.load %arg7[%c0_15, %c0_16] : memref<1x64xf32, #tpu.memory_space<vmem>>, vector<1x64xf32>
    %18 = vector.broadcast %17 : vector<1x64xf32> to vector<8x64xf32>
    %19 = arith.addf %16, %18 : vector<8x64xf32>
    %cst_17 = arith.constant 0.000000e+00 : f32
    %20 = vector.broadcast %cst_17 : f32 to vector<8x64xf32>
    %21 = arith.maximumf %19, %20 : vector<8x64xf32>
    %c0_18 = arith.constant 0 : index
    %c0_19 = arith.constant 0 : index
    %22 = vector.load %arg8[%c0_18, %c0_19] : memref<64x128xf32, #tpu.memory_space<vmem>>, vector<64x128xf32>
    %cst_20 = arith.constant dense<0.000000e+00> : vector<8x128xf32>
    %23 = tpu.matmul %21, %22, %cst_20 {dimension_numbers = #tpu.dot_dimension_numbers<[1], [0], [0], [1], [0, 0, 1, 1], [], []>} : vector<8x64xf32>, vector<64x128xf32>, vector<8x128xf32> -> vector<8x128xf32>
    %c0_21 = arith.constant 0 : index
    %c0_22 = arith.constant 0 : index
    %24 = vector.load %arg9[%c0_21, %c0_22] : memref<1x128xf32, #tpu.memory_space<vmem>>, vector<1x128xf32>
    %25 = vector.broadcast %24 : vector<1x128xf32> to vector<8x128xf32>
    %26 = arith.addf %23, %25 : vector<8x128xf32>
    %27 = arith.negf %26 : vector<8x128xf32>
    %28 = math.exp %27 : vector<8x128xf32>
    %cst_23 = arith.constant 1.000000e+00 : f32
    %29 = vector.broadcast %cst_23 : f32 to vector<8x128xf32>
    %30 = arith.addf %29, %28 : vector<8x128xf32>
    %31 = arith.divf %29, %30 : vector<8x128xf32>
    %cst_24 = arith.constant 0.353553385 : f32
    %32 = vector.broadcast %cst_24 : f32 to vector<8x128xf32>
    %33 = arith.mulf %31, %32 : vector<8x128xf32>
    %cst_25 = arith.constant 1.06066012 : f32
    %34 = vector.broadcast %cst_25 : f32 to vector<8x128xf32>
    %35 = arith.addf %33, %34 : vector<8x128xf32>
    %36 = tpu.iota {dimensions = array<i32: 1>} : vector<8x128xi32>
    %c3_i32 = arith.constant 3 : i32
    %37 = vector.broadcast %c3_i32 : i32 to vector<8x128xi32>
    %38 = arith.cmpi sge, %36, %37 : vector<8x128xi32>
    %c6_i32 = arith.constant 6 : i32
    %39 = vector.broadcast %c6_i32 : i32 to vector<8x128xi32>
    %40 = arith.cmpi slt, %36, %39 : vector<8x128xi32>
    %41 = arith.andi %38, %40 : vector<8x128xi1>
    %42 = arith.select %41, %35, %26 : vector<8x128xi1>, vector<8x128xf32>
    %c0_26 = arith.constant 0 : index
    %c0_27 = arith.constant 0 : index
    %43 = vector.load %arg10[%c0_26, %c0_27] : memref<8x128xf32, #tpu.memory_space<vmem>>, vector<8x128xf32>
    tpu.vector_store %arg10[%c0_26, %c0_27], %42 {strides = array<i32>} : memref<8x128xf32, #tpu.memory_space<vmem>>, vector<8x128xf32>,
    return
  }
  func.func @transform_0(%arg0: i32) -> (i32, i32) {
    %c0_i32 = arith.constant 0 : i32
    %c0_i32_0 = arith.constant 0 : i32
    return %arg0, %c0_i32 : i32, i32
  }
  func.func @transform_1(%arg0: i32) -> (i32, i32) {
    %c0_i32 = arith.constant 0 : i32
    %c0_i32_0 = arith.constant 0 : i32
    %c0_i32_1 = arith.constant 0 : i32
    return %c0_i32, %c0_i32_0 : i32, i32
  }
  func.func @transform_2(%arg0: i32) -> (i32, i32) {
    %c0_i32 = arith.constant 0 : i32
    %c0_i32_0 = arith.constant 0 : i32
    %c0_i32_1 = arith.constant 0 : i32
    return %c0_i32, %c0_i32_0 : i32, i32
  }
  func.func @transform_3(%arg0: i32) -> (i32, i32) {
    %c0_i32 = arith.constant 0 : i32
    %c0_i32_0 = arith.constant 0 : i32
    %c0_i32_1 = arith.constant 0 : i32
    return %c0_i32, %c0_i32_0 : i32, i32
  }
  func.func @transform_4(%arg0: i32) -> (i32, i32) {
    %c0_i32 = arith.constant 0 : i32
    %c0_i32_0 = arith.constant 0 : i32
    %c0_i32_1 = arith.constant 0 : i32
    return %c0_i32, %c0_i32_0 : i32, i32
  }
  func.func @transform_5(%arg0: i32) -> (i32, i32) {
    %c0_i32 = arith.constant 0 : i32
    %c0_i32_0 = arith.constant 0 : i32
    %c0_i32_1 = arith.constant 0 : i32
    return %c0_i32, %c0_i32_0 : i32, i32
  }
  func.func @transform_6(%arg0: i32) -> (i32, i32) {
    %c0_i32 = arith.constant 0 : i32
    %c0_i32_0 = arith.constant 0 : i32
    %c0_i32_1 = arith.constant 0 : i32
    return %c0_i32, %c0_i32_0 : i32, i32
  }
  func.func @transform_7(%arg0: i32) -> (i32, i32) {
    %c0_i32 = arith.constant 0 : i32
    %c0_i32_0 = arith.constant 0 : i32
    %c0_i32_1 = arith.constant 0 : i32
    return %c0_i32, %c0_i32_0 : i32, i32
  }
  func.func @transform_8(%arg0: i32) -> (i32, i32) {
    %c0_i32 = arith.constant 0 : i32
    %c0_i32_0 = arith.constant 0 : i32
    %c0_i32_1 = arith.constant 0 : i32
    return %c0_i32, %c0_i32_0 : i32, i32
  }
  func.func @transform_9(%arg0: i32) -> (i32, i32) {
    %c0_i32 = arith.constant 0 : i32
    %c0_i32_0 = arith.constant 0 : i32
    return %arg0, %c0_i32 : i32, i32
  }
}

</mosaic_0001>

<llo_original>
// kernel: tpu_custom_call.1
$region0: #{tpu_custom_call.1}
  #allocation0 [shape = 'u32[]', space=smem, size = 0x4, offset = 0x4, fixed_abs, tag = 'smem constant byte address 0x4 - core index']
  #allocation1 [shape = 'u32[144,128]{1,0:T(1,128)}', space=vmem, size = 0x12000, scoped, tag = 'internal scratch']
  %s0 = inlined_call_operand.vmem [shape: f32[8,16], index: 0, kind: input, shape index: {}]
  %s1 = inlined_call_operand.vmem [shape: f32[16,64], index: 1, kind: input, shape index: {}]
  %s2 = inlined_call_operand.vmem [shape: f32[1,64], index: 2, kind: input, shape index: {}]
  %s3 = inlined_call_operand.vmem [shape: f32[64,128], index: 3, kind: input, shape index: {}]
  %s4 = inlined_call_operand.vmem [shape: f32[1,128], index: 4, kind: input, shape index: {}]
  %s5 = inlined_call_operand.vmem [shape: f32[128,64], index: 5, kind: input, shape index: {}]
  %s6 = inlined_call_operand.vmem [shape: f32[1,64], index: 6, kind: input, shape index: {}]
  %s7 = inlined_call_operand.vmem [shape: f32[64,128], index: 7, kind: input, shape index: {}]
  %s8 = inlined_call_operand.vmem [shape: f32[1,128], index: 8, kind: input, shape index: {}]
  %s9 = inlined_call_operand.hbm [shape: f32[8,128], index: 9, kind: output, shape index: {}]
  %s10 = sld [smem:[#allocation0]]
  $region46: #{tpu_custom_call.1} parent=0
    _
  %s12 = ssub.s32 1, %s10
  %s13 = scalar_select 0, %s12, %s10
  $region1: #{tpu_custom_call.1} parent=0
    #allocation2 [shape = 'u8[4096]{0}', space=vmem, size = 0x1000, scoped, tag = 'output window, operand 0, single buffered']
    #allocation3 [shape = 's32[1]{0}', space=sflag, size = 0x4, scoped, tag = 'scoped memory for tpu_custom_call.1']
    %14 = vsyncpa [#allocation3], 0
    // Predicated region
    $region2: #{tpu_custom_call.1} parent=1 // pred_check
      _
    $region3: #{tpu_custom_call.1} parent=1 // pred_check_branch
      %16 = sbr.rel (0) target = $region5
    $region4: #{tpu_custom_call.1} parent=1 // pred_region
      _
    $region5: #{tpu_custom_call.1} parent=1 // pred_fallthru
      _
    // Predicated region
    $region6: #{tpu_custom_call.1} parent=1 // pred_check
      _
    $region7: #{tpu_custom_call.1} parent=1 // pred_check_branch
      %18 = sbr.rel (0) target = $region9
    $region8: #{tpu_custom_call.1} parent=1 // pred_region
      _
    $region9: #{tpu_custom_call.1} parent=1 // pred_fallthru
      _
    // Predicated region
    $region10: #{tpu_custom_call.1} parent=1 // pred_check
      _
    $region11: #{tpu_custom_call.1} parent=1 // pred_check_branch
      %20 = sbr.rel (0) target = $region13
    $region12: #{tpu_custom_call.1} parent=1 // pred_region
      _
    $region13: #{tpu_custom_call.1} parent=1 // pred_fallthru
      _
    // Predicated region
    $region14: #{tpu_custom_call.1} parent=1 // pred_check
      _
    $region15: #{tpu_custom_call.1} parent=1 // pred_check_branch
      %22 = sbr.rel (0) target = $region17
    $region16: #{tpu_custom_call.1} parent=1 // pred_region
      _
    $region17: #{tpu_custom_call.1} parent=1 // pred_fallthru
      _
    // Predicated region
    $region18: #{tpu_custom_call.1} parent=1 // pred_check
      _
    $region19: #{tpu_custom_call.1} parent=1 // pred_check_branch
      %24 = sbr.rel (0) target = $region21
    $region20: #{tpu_custom_call.1} parent=1 // pred_region
      _
    $region21: #{tpu_custom_call.1} parent=1 // pred_fallthru
      _
    // Predicated region
    $region22: #{tpu_custom_call.1} parent=1 // pred_check
      _
    $region23: #{tpu_custom_call.1} parent=1 // pred_check_branch
      %26 = sbr.rel (0) target = $region25
    $region24: #{tpu_custom_call.1} parent=1 // pred_region
      _
    $region25: #{tpu_custom_call.1} parent=1 // pred_fallthru
      _
    // Predicated region
    $region26: #{tpu_custom_call.1} parent=1 // pred_check
      _
    $region27: #{tpu_custom_call.1} parent=1 // pred_check_branch
      %28 = sbr.rel (0) target = $region29
    $region28: #{tpu_custom_call.1} parent=1 // pred_region
      _
    $region29: #{tpu_custom_call.1} parent=1 // pred_fallthru
      _
    // Predicated region
    $region30: #{tpu_custom_call.1} parent=1 // pred_check
      _
    $region31: #{tpu_custom_call.1} parent=1 // pred_check_branch
      %30 = sbr.rel (0) target = $region33
    $region32: #{tpu_custom_call.1} parent=1 // pred_region
      _
    $region33: #{tpu_custom_call.1} parent=1 // pred_fallthru
      _
    // Predicated region
    $region34: #{tpu_custom_call.1} parent=1 // pred_check
      _
    $region35: #{tpu_custom_call.1} parent=1 // pred_check_branch
      %32 = sbr.rel (0) target = $region37
    $region36: #{tpu_custom_call.1} parent=1 // pred_region
      _
    $region37: #{tpu_custom_call.1} parent=1 // pred_fallthru
      _
    %v33 = vld [vmem:[%s0] sm:$0xff]
    %v34 = vld [vmem:[%s1] sm:$0xff]
    %v35 = vld [vmem:[%s1 + $0x8] sm:$0xff]
    %v36 = vld [vmem:[%s2] sm:$0x1]
    %v38 = vlaneseq
    %v39 = vshrl.u32 %v38, 7
    %v40 = vsub.s32 0, %v39
    %v41 = vrot.slane %v36, %v40
    %vm43 = vcmask 130048
    %v45 = vsel %vm43, %v33, 0
    %47 = vmatprep.subr.mxu0 0.0
    %48 = vmatpush1.msra.mxu0 0.0
    %49 = vmatprep.subr.mxu0 0.0
    %50 = vmatpush1.msra.mxu0 0.0
    %51 = vmatprep.subr.mxu0 0.0
    %52 = vmatpush1.msra.mxu0 0.0
    %53 = vmatprep.subr.mxu0 0.0
    %54 = vmatpush1.msra.mxu0 0.0
    %55 = vmatprep.subr.mxu0 0.0
    %56 = vmatpush1.msra.mxu0 0.0
    %57 = vmatprep.subr.mxu0 0.0
    %58 = vmatpush1.msra.mxu0 0.0
    %59 = vmatprep.subr.mxu0 0.0
    %60 = vmatpush1.msra.mxu0 0.0
    %61 = vmatprep.subr.mxu0 0.0
    %62 = vmatpush1.msra.mxu0 0.0
    %63 = vmatprep.subr.mxu0 0.0
    %64 = vmatpush1.msra.mxu0 0.0
    %65 = vmatprep.subr.mxu0 0.0
    %66 = vmatpush1.msra.mxu0 0.0
    %67 = vmatprep.subr.mxu0 0.0
    %68 = vmatpush1.msra.mxu0 0.0
    %69 = vmatprep.subr.mxu0 0.0
    %70 = vmatpush1.msra.mxu0 0.0
    %71 = vmatprep.subr.mxu0 0.0
    %72 = vmatpush1.msra.mxu0 0.0
    %73 = vmatprep.subr.mxu0 0.0
    %74 = vmatpush1.msra.mxu0 0.0
    %75 = vmatprep.subr.mxu0 0.0
    %76 = vmatpush1.msra.mxu0 %v35
    %77 = vmatprep.subr.mxu0 0.0
    %78 = vmatpush1.msra.mxu0 %v34
    %79 = vmatprep.subr.mxu0 0.0
    %80 = vmatpush2.msra.mxu0 0.0
    %81 = vmatprep.subr.mxu0 0.0
    %82 = vmatpush2.msra.mxu0 0.0
    %83 = vmatprep.subr.mxu0 0.0
    %84 = vmatpush2.msra.mxu0 0.0
    %85 = vmatprep.subr.mxu0 0.0
    %86 = vmatpush2.msra.mxu0 0.0
    %87 = vmatprep.subr.mxu0 0.0
    %88 = vmatpush2.msra.mxu0 0.0
    %89 = vmatprep.subr.mxu0 0.0
    %90 = vmatpush2.msra.mxu0 0.0
    %91 = vmatprep.subr.mxu0 0.0
    %92 = vmatpush2.msra.mxu0 0.0
    %93 = vmatprep.subr.mxu0 0.0
    %94 = vmatpush2.msra.mxu0 0.0
    %95 = vmatprep.subr.mxu0 0.0
    %96 = vmatpush2.msra.mxu0 0.0
    %97 = vmatprep.subr.mxu0 0.0
    %98 = vmatpush2.msra.mxu0 0.0
    %99 = vmatprep.subr.mxu0 0.0
    %100 = vmatpush2.msra.mxu0 0.0
    %101 = vmatprep.subr.mxu0 0.0
    %102 = vmatpush2.msra.mxu0 0.0
    %103 = vmatprep.subr.mxu0 0.0
    %104 = vmatpush2.msra.mxu0 0.0
    %105 = vmatprep.subr.mxu0 0.0
    %106 = vmatpush2.msra.mxu0 0.0
    %107 = vmatprep.subr.mxu0 0.0
    %108 = vmatpush2.msra.mxu0 0.0
    %109 = vmatprep.subr.mxu0 0.0
    %110 = vmatpush2.msra.mxu0 0.0
    %111 = vmatprep.mubr.f32.mxu0 0.0
    %112 = vmatmul.mubr.f32.gmra.mxu0 %v45
    %v113 = vpop.f32.mrf.mxu0
    %v114 = vadd.f32 %v41, %v113
    %v115 = vpop.f32.mrf.mxu0
    %116 = vdwg.mxu0
    %v117 = vmax.f32 %v114, 0.0
    %v118 = vld [vmem:[%s3] sm:$0xff]
    %v119 = vld [vmem:[%s3 + $0x8] sm:$0xff]
    %v120 = vld [vmem:[%s3 + $0x10] sm:$0xff]
    %v121 = vld [vmem:[%s3 + $0x18] sm:$0xff]
    %v122 = vld [vmem:[%s3 + $0x20] sm:$0xff]
    %v123 = vld [vmem:[%s3 + $0x28] sm:$0xff]
    %v124 = vld [vmem:[%s3 + $0x30] sm:$0xff]
    %v125 = vld [vmem:[%s3 + $0x38] sm:$0xff]
    %v126 = vld [vmem:[%s4] sm:$0x1]
    %v128 = vlaneseq
    %v129 = vshrl.u32 %v128, 7
    %v130 = vsub.s32 0, %v129
    %v131 = vrot.slane %v126, %v130
    %vm133 = vcmask 523264
    %v135 = vsel %vm133, %v117, 0
    %137 = vmatprep.subr.mxu0 0.0
    %138 = vmatpush1.msra.mxu0 0.0
    %139 = vmatprep.subr.mxu0 0.0
    %140 = vmatpush1.msra.mxu0 0.0
    %141 = vmatprep.subr.mxu0 0.0
    %142 = vmatpush1.msra.mxu0 0.0
    %143 = vmatprep.subr.mxu0 0.0
    %144 = vmatpush1.msra.mxu0 0.0
    %145 = vmatprep.subr.mxu0 0.0
    %146 = vmatpush1.msra.mxu0 0.0
    %147 = vmatprep.subr.mxu0 0.0
    %148 = vmatpush1.msra.mxu0 0.0
    %149 = vmatprep.subr.mxu0 0.0
    %150 = vmatpush1.msra.mxu0 0.0
    %151 = vmatprep.subr.mxu0 0.0
    %152 = vmatpush1.msra.mxu0 0.0
    %153 = vmatprep.subr.mxu0 0.0
    %154 = vmatpush1.msra.mxu0 %v125
    %155 = vmatprep.subr.mxu0 0.0
    %156 = vmatpush1.msra.mxu0 %v124
    %157 = vmatprep.subr.mxu0 0.0
    %158 = vmatpush1.msra.mxu0 %v123
    %159 = vmatprep.subr.mxu0 0.0
    %160 = vmatpush1.msra.mxu0 %v122
    %161 = vmatprep.subr.mxu0 0.0
    %162 = vmatpush1.msra.mxu0 %v121
    %163 = vmatprep.subr.mxu0 0.0
    %164 = vmatpush1.msra.mxu0 %v120
    %165 = vmatprep.subr.mxu0 0.0
    %166 = vmatpush1.msra.mxu0 %v119
    %167 = vmatprep.subr.mxu0 0.0
    %168 = vmatpush1.msra.mxu0 %v118
    %169 = vmatprep.subr.mxu0 0.0
    %170 = vmatpush2.msra.mxu0 0.0
    %171 = vmatprep.subr.mxu0 0.0
    %172 = vmatpush2.msra.mxu0 0.0
    %173 = vmatprep.subr.mxu0 0.0
    %174 = vmatpush2.msra.mxu0 0.0
    %175 = vmatprep.subr.mxu0 0.0
    %176 = vmatpush2.msra.mxu0 0.0
    %177 = vmatprep.subr.mxu0 0.0
    %178 = vmatpush2.msra.mxu0 0.0
    %179 = vmatprep.subr.mxu0 0.0
    %180 = vmatpush2.msra.mxu0 0.0
    %181 = vmatprep.subr.mxu0 0.0
    %182 = vmatpush2.msra.mxu0 0.0
    %183 = vmatprep.subr.mxu0 0.0
    %184 = vmatpush2.msra.mxu0 0.0
    %185 = vmatprep.subr.mxu0 0.0
    %186 = vmatpush2.msra.mxu0 0.0
    %187 = vmatprep.subr.mxu0 0.0
    %188 = vmatpush2.msra.mxu0 0.0
    %189 = vmatprep.subr.mxu0 0.0
    %190 = vmatpush2.msra.mxu0 0.0
    %191 = vmatprep.subr.mxu0 0.0
    %192 = vmatpush2.msra.mxu0 0.0
    %193 = vmatprep.subr.mxu0 0.0
    %194 = vmatpush2.msra.mxu0 0.0
    %195 = vmatprep.subr.mxu0 0.0
    %196 = vmatpush2.msra.mxu0 0.0
    %197 = vmatprep.subr.mxu0 0.0
    %198 = vmatpush2.msra.mxu0 0.0
    %199 = vmatprep.subr.mxu0 0.0
    %200 = vmatpush2.msra.mxu0 0.0
    %201 = vmatprep.mubr.f32.mxu0 0.0
    %202 = vmatmul.mubr.f32.gmra.mxu0 %v135
    %v203 = vpop.f32.mrf.mxu0
    %v204 = vadd.f32 %v131, %v203
    %v205 = vpop.f32.mrf.mxu0
    %206 = vdwg.mxu0
    %v207 = vmax.f32 %v204, 0.0
    %v208 = vld [vmem:[%s5] sm:$0xff]
    %v209 = vld [vmem:[%s5 + $0x8] sm:$0xff]
    %v210 = vld [vmem:[%s5 + $0x10] sm:$0xff]
    %v211 = vld [vmem:[%s5 + $0x18] sm:$0xff]
    %v212 = vld [vmem:[%s5 + $0x20] sm:$0xff]
    %v213 = vld [vmem:[%s5 + $0x28] sm:$0xff]
    %v214 = vld [vmem:[%s5 + $0x30] sm:$0xff]
    %v215 = vld [vmem:[%s5 + $0x38] sm:$0xff]
    %v216 = vld [vmem:[%s5 + $0x40] sm:$0xff]
    %v217 = vld [vmem:[%s5 + $0x48] sm:$0xff]
    %v218 = vld [vmem:[%s5 + $0x50] sm:$0xff]
    %v219 = vld [vmem:[%s5 + $0x58] sm:$0xff]
    %v220 = vld [vmem:[%s5 + $0x60] sm:$0xff]
    %v221 = vld [vmem:[%s5 + $0x68] sm:$0xff]
    %v222 = vld [vmem:[%s5 + $0x70] sm:$0xff]
    %v223 = vld [vmem:[%s5 + $0x78] sm:$0xff]
    %v224 = vld [vmem:[%s6] sm:$0x1]
    %v226 = vlaneseq
    %v227 = vshrl.u32 %v226, 7
    %v228 = vsub.s32 0, %v227
    %v229 = vrot.slane %v224, %v228
    %231 = vmatprep.subr.mxu0 0.0
    %232 = vmatpush1.msra.mxu0 %v223
    %233 = vmatprep.subr.mxu0 0.0
    %234 = vmatpush1.msra.mxu0 %v222
    %235 = vmatprep.subr.mxu0 0.0
    %236 = vmatpush1.msra.mxu0 %v221
    %237 = vmatprep.subr.mxu0 0.0
    %238 = vmatpush1.msra.mxu0 %v220
    %239 = vmatprep.subr.mxu0 0.0
    %240 = vmatpush1.msra.mxu0 %v219
    %241 = vmatprep.subr.mxu0 0.0
    %242 = vmatpush1.msra.mxu0 %v218
    %243 = vmatprep.subr.mxu0 0.0
    %244 = vmatpush1.msra.mxu0 %v217
    %245 = vmatprep.subr.mxu0 0.0
    %246 = vmatpush1.msra.mxu0 %v216
    %247 = vmatprep.subr.mxu0 0.0
    %248 = vmatpush1.msra.mxu0 %v215
    %249 = vmatprep.subr.mxu0 0.0
    %250 = vmatpush1.msra.mxu0 %v214
    %251 = vmatprep.subr.mxu0 0.0
    %252 = vmatpush1.msra.mxu0 %v213
    %253 = vmatprep.subr.mxu0 0.0
    %254 = vmatpush1.msra.mxu0 %v212
    %255 = vmatprep.subr.mxu0 0.0
    %256 = vmatpush1.msra.mxu0 %v211
    %257 = vmatprep.subr.mxu0 0.0
    %258 = vmatpush1.msra.mxu0 %v210
    %259 = vmatprep.subr.mxu0 0.0
    %260 = vmatpush1.msra.mxu0 %v209
    %261 = vmatprep.subr.mxu0 0.0
    %262 = vmatpush1.msra.mxu0 %v208
    %263 = vmatprep.subr.mxu0 0.0
    %264 = vmatpush2.msra.mxu0 0.0
    %265 = vmatprep.subr.mxu0 0.0
    %266 = vmatpush2.msra.mxu0 0.0
    %267 = vmatprep.subr.mxu0 0.0
    %268 = vmatpush2.msra.mxu0 0.0
    %269 = vmatprep.subr.mxu0 0.0
    %270 = vmatpush2.msra.mxu0 0.0
    %271 = vmatprep.subr.mxu0 0.0
    %272 = vmatpush2.msra.mxu0 0.0
    %273 = vmatprep.subr.mxu0 0.0
    %274 = vmatpush2.msra.mxu0 0.0
    %275 = vmatprep.subr.mxu0 0.0
    %276 = vmatpush2.msra.mxu0 0.0
    %277 = vmatprep.subr.mxu0 0.0
    %278 = vmatpush2.msra.mxu0 0.0
    %279 = vmatprep.subr.mxu0 0.0
    %280 = vmatpush2.msra.mxu0 0.0
    %281 = vmatprep.subr.mxu0 0.0
    %282 = vmatpush2.msra.mxu0 0.0
    %283 = vmatprep.subr.mxu0 0.0
    %284 = vmatpush2.msra.mxu0 0.0
    %285 = vmatprep.subr.mxu0 0.0
    %286 = vmatpush2.msra.mxu0 0.0
    %287 = vmatprep.subr.mxu0 0.0
    %288 = vmatpush2.msra.mxu0 0.0
    %289 = vmatprep.subr.mxu0 0.0
    %290 = vmatpush2.msra.mxu0 0.0
    %291 = vmatprep.subr.mxu0 0.0
    %292 = vmatpush2.msra.mxu0 0.0
    %293 = vmatprep.subr.mxu0 0.0
    %294 = vmatpush2.msra.mxu0 0.0
    %295 = vmatprep.mubr.f32.mxu0 0.0
    %296 = vmatmul.mubr.f32.gmra.mxu0 %v207
    %v297 = vpop.f32.mrf.mxu0
    %v298 = vadd.f32 %v229, %v297
    %v299 = vpop.f32.mrf.mxu0
    %300 = vdwg.mxu0
    %v301 = vmax.f32 %v298, 0.0
    %v302 = vld [vmem:[%s7] sm:$0xff]
    %v303 = vld [vmem:[%s7 + $0x8] sm:$0xff]
    %v304 = vld [vmem:[%s7 + $0x10] sm:$0xff]
    %v305 = vld [vmem:[%s7 + $0x18] sm:$0xff]
    %v306 = vld [vmem:[%s7 + $0x20] sm:$0xff]
    %v307 = vld [vmem:[%s7 + $0x28] sm:$0xff]
    %v308 = vld [vmem:[%s7 + $0x30] sm:$0xff]
    %v309 = vld [vmem:[%s7 + $0x38] sm:$0xff]
    %v310 = vld [vmem:[%s8] sm:$0x1]
    %v312 = vlaneseq
    %v313 = vshrl.u32 %v312, 7
    %v314 = vsub.s32 0, %v313
    %v315 = vrot.slane %v310, %v314
    %v318 = vsel %vm133, %v301, 0
    %320 = vmatprep.subr.mxu0 0.0
    %321 = vmatpush1.msra.mxu0 0.0
    %322 = vmatprep.subr.mxu0 0.0
    %323 = vmatpush1.msra.mxu0 0.0
    %324 = vmatprep.subr.mxu0 0.0
    %325 = vmatpush1.msra.mxu0 0.0
    %326 = vmatprep.subr.mxu0 0.0
    %327 = vmatpush1.msra.mxu0 0.0
    %328 = vmatprep.subr.mxu0 0.0
    %329 = vmatpush1.msra.mxu0 0.0
    %330 = vmatprep.subr.mxu0 0.0
    %331 = vmatpush1.msra.mxu0 0.0
    %332 = vmatprep.subr.mxu0 0.0
    %333 = vmatpush1.msra.mxu0 0.0
    %334 = vmatprep.subr.mxu0 0.0
    %335 = vmatpush1.msra.mxu0 0.0
    %336 = vmatprep.subr.mxu0 0.0
    %337 = vmatpush1.msra.mxu0 %v309
    %338 = vmatprep.subr.mxu0 0.0
    %339 = vmatpush1.msra.mxu0 %v308
    %340 = vmatprep.subr.mxu0 0.0
    %341 = vmatpush1.msra.mxu0 %v307
    %342 = vmatprep.subr.mxu0 0.0
    %343 = vmatpush1.msra.mxu0 %v306
    %344 = vmatprep.subr.mxu0 0.0
    %345 = vmatpush1.msra.mxu0 %v305
    %346 = vmatprep.subr.mxu0 0.0
    %347 = vmatpush1.msra.mxu0 %v304
    %348 = vmatprep.subr.mxu0 0.0
    %349 = vmatpush1.msra.mxu0 %v303
    %350 = vmatprep.subr.mxu0 0.0
    %351 = vmatpush1.msra.mxu0 %v302
    %352 = vmatprep.subr.mxu0 0.0
    %353 = vmatpush2.msra.mxu0 0.0
    %354 = vmatprep.subr.mxu0 0.0
    %355 = vmatpush2.msra.mxu0 0.0
    %356 = vmatprep.subr.mxu0 0.0
    %357 = vmatpush2.msra.mxu0 0.0
    %358 = vmatprep.subr.mxu0 0.0
    %359 = vmatpush2.msra.mxu0 0.0
    %360 = vmatprep.subr.mxu0 0.0
    %361 = vmatpush2.msra.mxu0 0.0
    %362 = vmatprep.subr.mxu0 0.0
    %363 = vmatpush2.msra.mxu0 0.0
    %364 = vmatprep.subr.mxu0 0.0
    %365 = vmatpush2.msra.mxu0 0.0
    %366 = vmatprep.subr.mxu0 0.0
    %367 = vmatpush2.msra.mxu0 0.0
    %368 = vmatprep.subr.mxu0 0.0
    %369 = vmatpush2.msra.mxu0 0.0
    %370 = vmatprep.subr.mxu0 0.0
    %371 = vmatpush2.msra.mxu0 0.0
    %372 = vmatprep.subr.mxu0 0.0
    %373 = vmatpush2.msra.mxu0 0.0
    %374 = vmatprep.subr.mxu0 0.0
    %375 = vmatpush2.msra.mxu0 0.0
    %376 = vmatprep.subr.mxu0 0.0
    %377 = vmatpush2.msra.mxu0 0.0
    %378 = vmatprep.subr.mxu0 0.0
    %379 = vmatpush2.msra.mxu0 0.0
    %380 = vmatprep.subr.mxu0 0.0
    %381 = vmatpush2.msra.mxu0 0.0
    %382 = vmatprep.subr.mxu0 0.0
    %383 = vmatpush2.msra.mxu0 0.0
    %384 = vmatprep.mubr.f32.mxu0 0.0
    %385 = vmatmul.mubr.f32.gmra.mxu0 %v318
    %v386 = vpop.f32.mrf.mxu0
    %v387 = vadd.f32 %v315, %v386
    %v388 = vpop.f32.mrf.mxu0
    %389 = vdwg.mxu0
    %v390 = vxor.u32 %v387, 2147483648
    %v391 = vmul.f32 %v390, 1.442695
    %v392 = vpow.pop %v391
    %v393 = vadd.f32 %v392, 1.0
    %v394 = vrcp.pop %v393
    %v395 = vmul.f32 1.0, %v394
    %v396 = vmul.f32 %v395, 0.35355338
    %v397 = vadd.f32 %v396, 1.0606601
    %v398 = vlaneseq
    %v399 = vand.u32 %v398, 127
    %vm400 = vcmp.ge.s32.totalorder %v399, 3
    %vm401 = vcmp.lt.s32.totalorder %v399, 6
    %vm402 = vmand %vm400, %vm401
    %v403 = vsel %vm402, %v397, %v387
    %404 = vst [vmem:[#allocation2] sm:$0xff] %v403
    // Predicated region
    $region38: #{tpu_custom_call.1} parent=1 // pred_check
      _
    $region39: #{tpu_custom_call.1} parent=1 // pred_check_branch
      %406 = sbr.rel (0) target = $region41
    $region40: #{tpu_custom_call.1} parent=1 // pred_region
      %s408 = ssub.s32 128, 128
      %409 = vsyncadd [#allocation3], %s408
      %s411 = sshll.u32 [#allocation2], 4
      %s412 = int_to_ptr.vmem [resolvable:$true] %s411
      %414 = dma.vmem_to_hbm [thread:$0]  %s412, 128, %s9, [#allocation3]
    $region41: #{tpu_custom_call.1} parent=1 // pred_fallthru
      _
    // Predicated region
    $region42: #{tpu_custom_call.1} parent=1 // pred_check
      _
    $region43: #{tpu_custom_call.1} parent=1 // pred_check_branch
      %416 = sbr.rel (0) target = $region45
    $region44: #{tpu_custom_call.1} parent=1 // pred_region
      %417 = dma.done [#allocation3], 128
    $region45: #{tpu_custom_call.1} parent=1 // pred_fallthru
      _
    %418 = vsyncpa [#allocation3], 1

</llo_original>
